<compile_context>
chip_gen: v7x
topology: tpu7x:2x2x1
jax: 0.10.0
libtpu: 0.0.40
codegen_flags: <defaults>
</compile_context>

<pallas_src>
import functools

import jax
import jax.numpy as jnp
from jax.experimental import pallas as pl
from jax.experimental.pallas import tpu as pltpu

_LANE = 128


def _round_up(x, m):
    return ((x + m - 1) // m) * m


def _mlp_t_kernel(*refs, num_layers):
    # refs = (xT_ref, w0, b0, w1, b1, ..., w{L-1}, b{L-1}, outT_ref)
    # xT_ref: (in_dim, tile_b), w_k: (out_k, in_k), b_k: (out_k, 1),
    # outT_ref: (out_dim, tile_b).
    x_ref = refs[0]
    out_ref = refs[-1]
    wb_refs = refs[1:-1]

    h = x_ref[...]                                   # (in_dim, tile_b)
    for layer in range(num_layers):
        w = wb_refs[2 * layer][...]                  # (out_k, in_k)
        b = wb_refs[2 * layer + 1][...]              # (out_k, 1)
        h = jnp.dot(w, h, preferred_element_type=jnp.float32) + b
        if layer != num_layers - 1:
            h = jnp.maximum(h, 0.0)                  # ReLU on all but the last layer
    out_ref[...] = h.astype(out_ref.dtype)


def physics_informed_forward(x, weights, biases, *, tile_b=4096):
    """Run the MLP forward pass with a batch-tiled (transposed) Pallas kernel.

    Args:
      x: (batch, input_dim) float32.
      weights: list of (in_dim, out_dim) float32 arrays (so the math is
               x @ W + b, matching the PyTorch module's Linear layers).
      biases: list of (1, out_dim) float32 arrays.
      tile_b: desired batch rows per grid step (rounded to a multiple of 128,
              clamped so the grid keeps >= 2 steps when the batch allows it).
    Returns:
      (batch, output_dim) float32 prediction.
    """
    num_layers = len(weights)
    batch, in_dim = x.shape
    out_dim = weights[-1].shape[1]

    # ---- tile selection -----------------------------------------------------
    # Multiple of 128 so the batch axis is lane-dense; keep >= 2 grid steps
    # (v7x has 2 TensorCores); never grossly larger than the batch.
    desired = _round_up(max(int(tile_b), _LANE), _LANE)
    half = _round_up(pl.cdiv(batch, 2), _LANE)
    tile_b = max(_LANE, min(desired, half))
    batch_p = _round_up(batch, tile_b)

    # ---- transpose (and, only if needed, pad) the inputs --------------------
    xt = jnp.asarray(x, jnp.float32).T               # (in_dim, batch)
    if batch_p != batch:
        xt = jnp.pad(xt, ((0, 0), (0, batch_p - batch)))

    ws = [jnp.asarray(w, jnp.float32).T for w in weights]          # (out_k, in_k)
    bs = [jnp.asarray(b, jnp.float32).reshape(-1, 1) for b in biases]  # (out_k, 1)

    args = [xt]
    param_specs = []
    for w, b in zip(ws, bs):
        args.append(w)
        args.append(b)
        # Parameters: full-array blocks, same block index for every grid step
        # -> resident in VMEM across the whole grid.
        param_specs.append(pl.BlockSpec(w.shape, lambda i: (0, 0)))
        param_specs.append(pl.BlockSpec(b.shape, lambda i: (0, 0)))

    grid = (batch_p // tile_b,)
    kernel = functools.partial(_mlp_t_kernel, num_layers=num_layers)

    flops = 2 * batch_p * sum(w.shape[0] * w.shape[1] for w in ws)
    param_bytes = 4 * (sum(w.size for w in ws) + sum(b.size for b in bs))
    bytes_accessed = 4 * batch_p * (in_dim + out_dim) + param_bytes
    cost = pl.CostEstimate(flops=flops, transcendentals=0,
                           bytes_accessed=bytes_accessed)

    out_t = pl.pallas_call(
        kernel,
        out_shape=jax.ShapeDtypeStruct((out_dim, batch_p), jnp.float32),
        grid=grid,
        in_specs=[pl.BlockSpec((in_dim, tile_b), lambda i: (0, i))] + param_specs,
        out_specs=pl.BlockSpec((out_dim, tile_b), lambda i: (0, i)),
        compiler_params=pltpu.CompilerParams(
            dimension_semantics=("parallel",),  # shard batch tiles across TCs (v7x)
        ),
        cost_estimate=cost,
    )(*args)

    return out_t[:, :batch].T                        # (batch, out_dim)


def init_params(key, input_dim, channels_depths, output_dim):
    """Deterministic parameter init (uniform, PyTorch-Linear-like bounds)."""
    dims = [input_dim] + list(channels_depths) + [output_dim]
    weights, biases = [], []
    for i in range(len(dims) - 1):
        fan_in, fan_out = dims[i], dims[i + 1]
        key, wk, bk = jax.random.split(key, 3)
        bound = 1.0 / jnp.sqrt(jnp.float32(fan_in))
        w = jax.random.uniform(wk, (fan_in, fan_out), jnp.float32, -bound, bound)
        b = jax.random.uniform(bk, (1, fan_out), jnp.float32, -bound, bound)
        weights.append(w)
        biases.append(b)
    return weights, biases


def reference_forward(x, weights, biases):
    h = x
    for i, (w, b) in enumerate(zip(weights, biases)):
        h = h @ w + b
        if i != len(weights) - 1:
            h = jnp.maximum(h, 0.0)
    return h


if __name__ == "__main__":
    # Shapes implied by get_loss: output_dim = 6, input_dim = 5.
    input_dim = 5
    channels_depths = [32, 32]
    output_dim = 6
    batch = 512  # small, but still yields 2 grid steps (tile_b clamps to 256)

    key = jax.random.PRNGKey(0)
    key, xk = jax.random.split(key)
    x = jax.random.normal(xk, (batch, input_dim), dtype=jnp.float32)

    weights, biases = init_params(key, input_dim, channels_depths, output_dim)

    out = physics_informed_forward(x, weights, biases)
    out = jax.block_until_ready(out)

    ref = reference_forward(x, weights, biases)
    assert out.shape == (batch, output_dim)
    assert jnp.allclose(out, ref, atol=1e-4, rtol=1e-4)

    # TODO(synk): get_loss uses torch.autograd.grad (input-Jacobian physics
    # residuals) plus the `wheelbase` parameter / MSELoss — training-time loss,
    # not part of forward(), so it is not reproduced in the kernel.
    print("KERNEL_OK")
</pallas_src>

<mosaic_0001>
module attributes {stable_mosaic.version = 11 : i64} {
  func.func @_mlp_t_kernel(%arg0: i32, %arg1: memref<5x256xf32, #tpu.memory_space<vmem>>, %arg2: memref<32x5xf32, #tpu.memory_space<vmem>>, %arg3: memref<32x1xf32, #tpu.memory_space<vmem>>, %arg4: memref<32x32xf32, #tpu.memory_space<vmem>>, %arg5: memref<32x1xf32, #tpu.memory_space<vmem>>, %arg6: memref<6x32xf32, #tpu.memory_space<vmem>>, %arg7: memref<6x1xf32, #tpu.memory_space<vmem>>, %arg8: memref<6x256xf32, #tpu.memory_space<vmem>>) attributes {dimension_semantics = [#tpu.dimension_semantics<parallel>], iteration_bounds = array<i64: 2>, scalar_prefetch = 0 : i64, scratch_operands = 0 : i64, tpu.core_type = #tpu.core_type<tc>, window_params = [{transform_indices = @transform_0, window_bounds = array<i64: 5, 256>}, {pipeline_mode = #tpu.pipeline_mode<synchronous>, transform_indices = @transform_1, window_bounds = array<i64: 32, 5>}, {pipeline_mode = #tpu.pipeline_mode<synchronous>, transform_indices = @transform_2, window_bounds = array<i64: 32, 1>}, {pipeline_mode = #tpu.pipeline_mode<synchronous>, transform_indices = @transform_3, window_bounds = array<i64: 32, 32>}, {pipeline_mode = #tpu.pipeline_mode<synchronous>, transform_indices = @transform_4, window_bounds = array<i64: 32, 1>}, {pipeline_mode = #tpu.pipeline_mode<synchronous>, transform_indices = @transform_5, window_bounds = array<i64: 6, 32>}, {pipeline_mode = #tpu.pipeline_mode<synchronous>, transform_indices = @transform_6, window_bounds = array<i64: 6, 1>}, {transform_indices = @transform_7, window_bounds = array<i64: 6, 256>}]} {
    %c0 = arith.constant 0 : index
    %c0_0 = arith.constant 0 : index
    %0 = vector.load %arg1[%c0, %c0_0] : memref<5x256xf32, #tpu.memory_space<vmem>>, vector<5x256xf32>
    %c0_1 = arith.constant 0 : index
    %c0_2 = arith.constant 0 : index
    %1 = vector.load %arg2[%c0_1, %c0_2] : memref<32x5xf32, #tpu.memory_space<vmem>>, vector<32x5xf32>
    %c0_3 = arith.constant 0 : index
    %c0_4 = arith.constant 0 : index
    %2 = vector.load %arg3[%c0_3, %c0_4] : memref<32x1xf32, #tpu.memory_space<vmem>>, vector<32x1xf32>
    %cst = arith.constant dense<0.000000e+00> : vector<32x256xf32>
    %3 = tpu.matmul %1, %0, %cst {dimension_numbers = #tpu.dot_dimension_numbers<[1], [0], [0], [1], [0, 0, 1, 1], [], []>} : vector<32x5xf32>, vector<5x256xf32>, vector<32x256xf32> -> vector<32x256xf32>
    %4 = vector.broadcast %2 : vector<32x1xf32> to vector<32x256xf32>
    %5 = arith.addf %3, %4 : vector<32x256xf32>
    %cst_5 = arith.constant 0.000000e+00 : f32
    %6 = vector.broadcast %cst_5 : f32 to vector<32x256xf32>
    %7 = arith.maximumf %5, %6 : vector<32x256xf32>
    %c0_6 = arith.constant 0 : index
    %c0_7 = arith.constant 0 : index
    %8 = vector.load %arg4[%c0_6, %c0_7] : memref<32x32xf32, #tpu.memory_space<vmem>>, vector<32x32xf32>
    %c0_8 = arith.constant 0 : index
    %c0_9 = arith.constant 0 : index
    %9 = vector.load %arg5[%c0_8, %c0_9] : memref<32x1xf32, #tpu.memory_space<vmem>>, vector<32x1xf32>
    %cst_10 = arith.constant dense<0.000000e+00> : vector<32x256xf32>
    %10 = tpu.matmul %8, %7, %cst_10 {dimension_numbers = #tpu.dot_dimension_numbers<[1], [0], [0], [1], [0, 0, 1, 1], [], []>} : vector<32x32xf32>, vector<32x256xf32>, vector<32x256xf32> -> vector<32x256xf32>
    %11 = vector.broadcast %9 : vector<32x1xf32> to vector<32x256xf32>
    %12 = arith.addf %10, %11 : vector<32x256xf32>
    %cst_11 = arith.constant 0.000000e+00 : f32
    %13 = vector.broadcast %cst_11 : f32 to vector<32x256xf32>
    %14 = arith.maximumf %12, %13 : vector<32x256xf32>
    %c0_12 = arith.constant 0 : index
    %c0_13 = arith.constant 0 : index
    %15 = vector.load %arg6[%c0_12, %c0_13] : memref<6x32xf32, #tpu.memory_space<vmem>>, vector<6x32xf32>
    %c0_14 = arith.constant 0 : index
    %c0_15 = arith.constant 0 : index
    %16 = vector.load %arg7[%c0_14, %c0_15] : memref<6x1xf32, #tpu.memory_space<vmem>>, vector<6x1xf32>
    %cst_16 = arith.constant dense<0.000000e+00> : vector<6x256xf32>
    %17 = tpu.matmul %15, %14, %cst_16 {dimension_numbers = #tpu.dot_dimension_numbers<[1], [0], [0], [1], [0, 0, 1, 1], [], []>} : vector<6x32xf32>, vector<32x256xf32>, vector<6x256xf32> -> vector<6x256xf32>
    %18 = vector.broadcast %16 : vector<6x1xf32> to vector<6x256xf32>
    %19 = arith.addf %17, %18 : vector<6x256xf32>
    %c0_17 = arith.constant 0 : index
    %c0_18 = arith.constant 0 : index
    %20 = vector.load %arg8[%c0_17, %c0_18] : memref<6x256xf32, #tpu.memory_space<vmem>>, vector<6x256xf32>
    tpu.vector_store %arg8[%c0_17, %c0_18], %19 {strides = array<i32>} : memref<6x256xf32, #tpu.memory_space<vmem>>, vector<6x256xf32>,
    return
  }
  func.func @transform_0(%arg0: i32) -> (i32, i32) {
    %c0_i32 = arith.constant 0 : i32
    %c0_i32_0 = arith.constant 0 : i32
    return %c0_i32, %arg0 : i32, i32
  }
  func.func @transform_1(%arg0: i32) -> (i32, i32) {
    %c0_i32 = arith.constant 0 : i32
    %c0_i32_0 = arith.constant 0 : i32
    %c0_i32_1 = arith.constant 0 : i32
    return %c0_i32, %c0_i32_0 : i32, i32
  }
  func.func @transform_2(%arg0: i32) -> (i32, i32) {
    %c0_i32 = arith.constant 0 : i32
    %c0_i32_0 = arith.constant 0 : i32
    %c0_i32_1 = arith.constant 0 : i32
    return %c0_i32, %c0_i32_0 : i32, i32
  }
  func.func @transform_3(%arg0: i32) -> (i32, i32) {
    %c0_i32 = arith.constant 0 : i32
    %c0_i32_0 = arith.constant 0 : i32
    %c0_i32_1 = arith.constant 0 : i32
    return %c0_i32, %c0_i32_0 : i32, i32
  }
  func.func @transform_4(%arg0: i32) -> (i32, i32) {
    %c0_i32 = arith.constant 0 : i32
    %c0_i32_0 = arith.constant 0 : i32
    %c0_i32_1 = arith.constant 0 : i32
    return %c0_i32, %c0_i32_0 : i32, i32
  }
  func.func @transform_5(%arg0: i32) -> (i32, i32) {
    %c0_i32 = arith.constant 0 : i32
    %c0_i32_0 = arith.constant 0 : i32
    %c0_i32_1 = arith.constant 0 : i32
    return %c0_i32, %c0_i32_0 : i32, i32
  }
  func.func @transform_6(%arg0: i32) -> (i32, i32) {
    %c0_i32 = arith.constant 0 : i32
    %c0_i32_0 = arith.constant 0 : i32
    %c0_i32_1 = arith.constant 0 : i32
    return %c0_i32, %c0_i32_0 : i32, i32
  }
  func.func @transform_7(%arg0: i32) -> (i32, i32) {
    %c0_i32 = arith.constant 0 : i32
    %c0_i32_0 = arith.constant 0 : i32
    return %c0_i32, %arg0 : i32, i32
  }
}

</mosaic_0001>

<llo_original>
// kernel: tpu_custom_call.1
$region0: #{tpu_custom_call.1}
  #allocation0 [shape = 'u32[]', space=smem, size = 0x4, offset = 0x4, fixed_abs, tag = 'smem constant byte address 0x4 - core index']
  #allocation1 [shape = 'u32[144,128]{1,0:T(1,128)}', space=vmem, size = 0x12000, scoped, tag = 'internal scratch']
  %s0 = inlined_call_operand.vmem [shape: f32[5,512], index: 0, kind: input, shape index: {}]
  %s1 = inlined_call_operand.vmem [shape: f32[32,5], index: 1, kind: input, shape index: {}]
  %s2 = inlined_call_operand.vmem [shape: f32[32,1], index: 2, kind: input, shape index: {}]
  %s3 = inlined_call_operand.vmem [shape: f32[32,32], index: 3, kind: input, shape index: {}]
  %s4 = inlined_call_operand.vmem [shape: f32[32,1], index: 4, kind: input, shape index: {}]
  %s5 = inlined_call_operand.vmem [shape: f32[6,32], index: 5, kind: input, shape index: {}]
  %s6 = inlined_call_operand.vmem [shape: f32[6,1], index: 6, kind: input, shape index: {}]
  %s7 = inlined_call_operand.hbm [shape: f32[6,512], index: 7, kind: output, shape index: {}]
  %s8 = sld [smem:[#allocation0]]
  $region61: #{tpu_custom_call.1} parent=0
    _
  %s10 = ssub.s32 1, %s8
  %s11 = scalar_select 0, %s10, %s8
  $region1: #{tpu_custom_call.1} parent=0
    #allocation2 [shape = 'u8[16384]{0}', space=vmem, size = 0x4000, scoped, tag = 'output window, operand 0']
    #allocation3 [shape = 's32[2]{0}', space=sflag, size = 0x8, scoped, tag = 'scoped memory for tpu_custom_call.1']
    %12 = vsyncpa [#allocation3], 0
    %s13 = scalar_lea.sflag [#allocation3], 1
    %14 = vsyncpa %s13, 0
    loop: start=0, step=1, limit=4
    $region2: #{tpu_custom_call.1} parent=1 // loop_pre_header
      _
    $region3: #{tpu_custom_call.1} parent=1 // loop_header
      %s16 = sphi 0, %s20
      %p17 = scmp.ge.s32.totalorder %s16, 4
      %s26 = sphi 0, %s28
      %s29 = sphi 0, %s26
      %s30 = sphi 0, %s29
      %s46 = sphi 0, %s30
      %s50 = sphi 0, %s50
      %s52 = sphi 0, %s50
      %s53 = sphi 0, %s52
      %s67 = sphi 0, %s53
      %s71 = sphi 0, %s71
      %s73 = sphi 0, %s71
      %s74 = sphi 0, %s73
      %s88 = sphi 0, %s74
      %s92 = sphi 0, %s92
      %s94 = sphi 0, %s92
      %s95 = sphi 0, %s94
      %s109 = sphi 0, %s95
      %s113 = sphi 0, %s113
      %s115 = sphi 0, %s113
      %s116 = sphi 0, %s115
      %s130 = sphi 0, %s116
      %s134 = sphi 0, %s134
      %s136 = sphi 0, %s134
      %s137 = sphi 0, %s136
      %s151 = sphi 0, %s137
      %s155 = sphi 0, %s155
      %s157 = sphi 0, %s155
      %s158 = sphi 0, %s157
      %s172 = sphi 0, %s158
      %s178 = sphi 0, %s180
      %s181 = sphi 0, %s178
      %s182 = sphi 0, %s181
      %s198 = sphi 0, %s182
    $region4: #{tpu_custom_call.1} parent=1 // loop_header_branch
      %19 = sbr.rel (%p17) target = $region8
    $region5: #{tpu_custom_call.1} parent=1 // loop_body
      %s21 = ssub.s32 %s16, 1
      %s22 = ssub.s32 %s16, 2
      %s23 = sadd.s32 %s16, 1
      %s24 = ssub.s32 %s16, %s23
      %p25 = scmp.eq.s32.totalorder %s24, 0
      %s27 = sadd.s32 %s26, 1
      %s28 = scalar_select %p25, %s26, %s27
      %p31 = pneg %p25
      %p32 = scmp.eq.s32.totalorder %s16, 1
      %p33 = por %p31, %p32
      %p34 = scmp.ne.s32.totalorder %s26, %s29
      %p35 = scmp.eq.s32.totalorder %s16, 0
      %p36 = por %p34, %p35
      %p37 = scmp.ne.s32.totalorder %s26, %s29
      %p38 = scmp.eq.s32.totalorder %s21, 1
      %p39 = por %p37, %p38
      %p40 = scmp.ne.s32.totalorder %s29, %s30
      %p41 = scmp.eq.s32.totalorder %s21, 0
      %p42 = por %p40, %p41
      %p43 = scmp.ne.s32.totalorder %s29, %s30
      %p44 = scmp.eq.s32.totalorder %s22, 1
      %p45 = por %p43, %p44
      %p47 = scmp.ne.s32.totalorder %s30, %s46
      %p48 = scmp.eq.s32.totalorder %s22, 0
      %p49 = por %p47, %p48
      %s51 = sadd.s32 %s50, 1
      %p54 = scmp.eq.s32.totalorder %s16, 1
      %p55 = scmp.ne.s32.totalorder %s50, %s52
      %p56 = scmp.eq.s32.totalorder %s16, 0
      %p57 = por %p55, %p56
      %p58 = scmp.ne.s32.totalorder %s50, %s52
      %p59 = scmp.eq.s32.totalorder %s21, 1
      %p60 = por %p58, %p59
      %p61 = scmp.ne.s32.totalorder %s52, %s53
      %p62 = scmp.eq.s32.totalorder %s21, 0
      %p63 = por %p61, %p62
      %p64 = scmp.ne.s32.totalorder %s52, %s53
      %p65 = scmp.eq.s32.totalorder %s22, 1
      %p66 = por %p64, %p65
      %p68 = scmp.ne.s32.totalorder %s53, %s67
      %p69 = scmp.eq.s32.totalorder %s22, 0
      %p70 = por %p68, %p69
      %s72 = sadd.s32 %s71, 1
      %p75 = scmp.eq.s32.totalorder %s16, 1
      %p76 = scmp.ne.s32.totalorder %s71, %s73
      %p77 = scmp.eq.s32.totalorder %s16, 0
      %p78 = por %p76, %p77
      %p79 = scmp.ne.s32.totalorder %s71, %s73
      %p80 = scmp.eq.s32.totalorder %s21, 1
      %p81 = por %p79, %p80
      %p82 = scmp.ne.s32.totalorder %s73, %s74
      %p83 = scmp.eq.s32.totalorder %s21, 0
      %p84 = por %p82, %p83
      %p85 = scmp.ne.s32.totalorder %s73, %s74
      %p86 = scmp.eq.s32.totalorder %s22, 1
      %p87 = por %p85, %p86
      %p89 = scmp.ne.s32.totalorder %s74, %s88
      %p90 = scmp.eq.s32.totalorder %s22, 0
      %p91 = por %p89, %p90
      %s93 = sadd.s32 %s92, 1
      %p96 = scmp.eq.s32.totalorder %s16, 1
      %p97 = scmp.ne.s32.totalorder %s92, %s94
      %p98 = scmp.eq.s32.totalorder %s16, 0
      %p99 = por %p97, %p98
      %p100 = scmp.ne.s32.totalorder %s92, %s94
      %p101 = scmp.eq.s32.totalorder %s21, 1
      %p102 = por %p100, %p101
      %p103 = scmp.ne.s32.totalorder %s94, %s95
      %p104 = scmp.eq.s32.totalorder %s21, 0
      %p105 = por %p103, %p104
      %p106 = scmp.ne.s32.totalorder %s94, %s95
      %p107 = scmp.eq.s32.totalorder %s22, 1
      %p108 = por %p106, %p107
      %p110 = scmp.ne.s32.totalorder %s95, %s109
      %p111 = scmp.eq.s32.totalorder %s22, 0
      %p112 = por %p110, %p111
      %s114 = sadd.s32 %s113, 1
      %p117 = scmp.eq.s32.totalorder %s16, 1
      %p118 = scmp.ne.s32.totalorder %s113, %s115
      %p119 = scmp.eq.s32.totalorder %s16, 0
      %p120 = por %p118, %p119
      %p121 = scmp.ne.s32.totalorder %s113, %s115
      %p122 = scmp.eq.s32.totalorder %s21, 1
      %p123 = por %p121, %p122
      %p124 = scmp.ne.s32.totalorder %s115, %s116
      %p125 = scmp.eq.s32.totalorder %s21, 0
      %p126 = por %p124, %p125
      %p127 = scmp.ne.s32.totalorder %s115, %s116
      %p128 = scmp.eq.s32.totalorder %s22, 1
      %p129 = por %p127, %p128
      %p131 = scmp.ne.s32.totalorder %s116, %s130
      %p132 = scmp.eq.s32.totalorder %s22, 0
      %p133 = por %p131, %p132
      %s135 = sadd.s32 %s134, 1
      %p138 = scmp.eq.s32.totalorder %s16, 1
      %p139 = scmp.ne.s32.totalorder %s134, %s136
      %p140 = scmp.eq.s32.totalorder %s16, 0
      %p141 = por %p139, %p140
      %p142 = scmp.ne.s32.totalorder %s134, %s136
      %p143 = scmp.eq.s32.totalorder %s21, 1
      %p144 = por %p142, %p143
      %p145 = scmp.ne.s32.totalorder %s136, %s137
      %p146 = scmp.eq.s32.totalorder %s21, 0
      %p147 = por %p145, %p146
      %p148 = scmp.ne.s32.totalorder %s136, %s137
      %p149 = scmp.eq.s32.totalorder %s22, 1
      %p150 = por %p148, %p149
      %p152 = scmp.ne.s32.totalorder %s137, %s151
      %p153 = scmp.eq.s32.totalorder %s22, 0
      %p154 = por %p152, %p153
      %s156 = sadd.s32 %s155, 1
      %p159 = scmp.eq.s32.totalorder %s16, 1
      %p160 = scmp.ne.s32.totalorder %s155, %s157
      %p161 = scmp.eq.s32.totalorder %s16, 0
      %p162 = por %p160, %p161
      %p163 = scmp.ne.s32.totalorder %s155, %s157
      %p164 = scmp.eq.s32.totalorder %s21, 1
      %p165 = por %p163, %p164
      %p166 = scmp.ne.s32.totalorder %s157, %s158
      %p167 = scmp.eq.s32.totalorder %s21, 0
      %p168 = por %p166, %p167
      %p169 = scmp.ne.s32.totalorder %s157, %s158
      %p170 = scmp.eq.s32.totalorder %s22, 1
      %p171 = por %p169, %p170
      %p173 = scmp.ne.s32.totalorder %s158, %s172
      %p174 = scmp.eq.s32.totalorder %s22, 0
      %p175 = por %p173, %p174
      %s176 = ssub.s32 %s16, %s23
      %p177 = scmp.eq.s32.totalorder %s176, 0
      %s179 = sadd.s32 %s178, 1
      %s180 = scalar_select %p177, %s178, %s179
      %p183 = pneg %p177
      %p184 = scmp.eq.s32.totalorder %s16, 1
      %p185 = por %p183, %p184
      %p186 = scmp.ne.s32.totalorder %s178, %s181
      %p187 = scmp.eq.s32.totalorder %s16, 0
      %p188 = por %p186, %p187
      %p189 = scmp.ne.s32.totalorder %s178, %s181
      %p190 = scmp.eq.s32.totalorder %s21, 1
      %p191 = por %p189, %p190
      %p192 = scmp.ne.s32.totalorder %s181, %s182
      %p193 = scmp.eq.s32.totalorder %s21, 0
      %p194 = por %p192, %p193
      %p195 = scmp.ne.s32.totalorder %s181, %s182
      %p196 = scmp.eq.s32.totalorder %s22, 1
      %p197 = por %p195, %p196
      %p199 = scmp.ne.s32.totalorder %s182, %s198
      %p200 = scmp.eq.s32.totalorder %s22, 0
      %p201 = por %p199, %p200
      %p202 = scmp.le.s32.totalorder 1, %s16
      %p203 = scmp.lt.s32.totalorder %s16, 3
      %p204 = pnand %p202, %p203
      %p205 = pneg %p204
      // Predicated region
      $region9: #{tpu_custom_call.1} parent=5 // pred_check
        _
      $region10: #{tpu_custom_call.1} parent=5 // pred_check_branch
        %207 = sbr.rel (%p204) target = $region12
      $region11: #{tpu_custom_call.1} parent=5 // pred_region
        %s208 = ssub.s32 %s16, 1
        // Predicated region
        $region13: #{tpu_custom_call.1} parent=11 // pred_check
          %p209 = pneg %p63
        $region14: #{tpu_custom_call.1} parent=11 // pred_check_branch
          %211 = sbr.rel (%p209) target = $region16
        $region15: #{tpu_custom_call.1} parent=11 // pred_region
          _
        $region16: #{tpu_custom_call.1} parent=11 // pred_fallthru
          _
        // Predicated region
        $region17: #{tpu_custom_call.1} parent=11 // pred_check
          %p212 = pneg %p84
        $region18: #{tpu_custom_call.1} parent=11 // pred_check_branch
          %214 = sbr.rel (%p212) target = $region20
        $region19: #{tpu_custom_call.1} parent=11 // pred_region
          _
        $region20: #{tpu_custom_call.1} parent=11 // pred_fallthru
          _
        // Predicated region
        $region21: #{tpu_custom_call.1} parent=11 // pred_check
          %p215 = pneg %p105
        $region22: #{tpu_custom_call.1} parent=11 // pred_check_branch
          %217 = sbr.rel (%p215) target = $region24
        $region23: #{tpu_custom_call.1} parent=11 // pred_region
          _
        $region24: #{tpu_custom_call.1} parent=11 // pred_fallthru
          _
        // Predicated region
        $region25: #{tpu_custom_call.1} parent=11 // pred_check
          %p218 = pneg %p126
        $region26: #{tpu_custom_call.1} parent=11 // pred_check_branch
          %220 = sbr.rel (%p218) target = $region28
        $region27: #{tpu_custom_call.1} parent=11 // pred_region
          _
        $region28: #{tpu_custom_call.1} parent=11 // pred_fallthru
          _
        // Predicated region
        $region29: #{tpu_custom_call.1} parent=11 // pred_check
          %p221 = pneg %p147
        $region30: #{tpu_custom_call.1} parent=11 // pred_check_branch
          %223 = sbr.rel (%p221) target = $region32
        $region31: #{tpu_custom_call.1} parent=11 // pred_region
          _
        $region32: #{tpu_custom_call.1} parent=11 // pred_fallthru
          _
        // Predicated region
        $region33: #{tpu_custom_call.1} parent=11 // pred_check
          %p224 = pneg %p168
        $region34: #{tpu_custom_call.1} parent=11 // pred_check_branch
          %226 = sbr.rel (%p224) target = $region36
        $region35: #{tpu_custom_call.1} parent=11 // pred_region
          _
        $region36: #{tpu_custom_call.1} parent=11 // pred_fallthru
          _
      $region12: #{tpu_custom_call.1} parent=5 // pred_fallthru
        _
      %p227 = scmp.lt.s32.totalorder %s16, 2
      // Predicated region
      $region37: #{tpu_custom_call.1} parent=5 // pred_check
        %p228 = pneg %p227
      $region38: #{tpu_custom_call.1} parent=5 // pred_check_branch
        %230 = sbr.rel (%p228) target = $region40
      $region39: #{tpu_custom_call.1} parent=5 // pred_region
        // Predicated region
        $region41: #{tpu_custom_call.1} parent=39 // pred_check
          %p231 = pneg %p36
        $region42: #{tpu_custom_call.1} parent=39 // pred_check_branch
          %233 = sbr.rel (%p231) target = $region44
        $region43: #{tpu_custom_call.1} parent=39 // pred_region
          %s234 = smul.u32 2, %s16
          %p235 = scmp.lt.s32.totalorder %s234, 3
          %s236 = scalar_select %p235, %s234, 3
          %s237 = smul.addr %s236, 8
          %s238 = scalar_lea.vmem %s0, %s237
          %s239 = smul.u32 2, %s16
        $region44: #{tpu_custom_call.1} parent=39 // pred_fallthru
          _
      $region40: #{tpu_custom_call.1} parent=5 // pred_fallthru
        _
      %p240 = scmp.le.s32.totalorder 1, %s16
      %p241 = scmp.lt.s32.totalorder %s16, 3
      %p242 = pnand %p240, %p241
      %p243 = pneg %p242
      // Predicated region
      $region45: #{tpu_custom_call.1} parent=5 // pred_check
        _
      $region46: #{tpu_custom_call.1} parent=5 // pred_check_branch
        %245 = sbr.rel (%p242) target = $region48
      $region47: #{tpu_custom_call.1} parent=5 // pred_region
        %s246 = ssub.s32 %s16, 1
        %s247 = smul.u32 2, %s21
        %p248 = scmp.lt.s32.totalorder %s247, 3
        %s249 = scalar_select %p248, %s247, 3
        %s250 = smul.addr %s249, 8
        %s251 = scalar_lea.vmem %s0, %s250
        %p252 = pneg %p42
        %p253 = pneg %p39
        %p254 = pneg %p63
        %p255 = pneg %p60
        %p256 = pneg %p84
        %p257 = pneg %p81
        %p258 = pneg %p105
        %p259 = pneg %p102
        %p260 = pneg %p126
        %p261 = pneg %p123
        %p262 = pneg %p147
        %p263 = pneg %p144
        %p264 = pneg %p168
        %p265 = pneg %p165
        %p266 = pneg %p194
        %p267 = pneg %p191
        %s268 = sand.u32 %s181, 1
        %s269 = scalar_lea.sflag [#allocation3], %s268
        %s270 = sand.u32 %s181, 1
        %s271 = smul.addr %s270, 16
        %s272 = scalar_lea.vmem [#allocation2], %s271
        %s273 = smul.u32 2, %s21
        %p274 = scmp.lt.s32.totalorder %s273, 3
        %s275 = scalar_select %p274, %s273, 3
        %s276 = smul.addr %s275, 8
        %s277 = scalar_lea.vmem %s0, %s276
        %s278 = smul.u32 2, %s21
        %s279 = smul.u32 2, %s21
        %v280 = vld [vmem:[%s277] sm:$0x1f]
        %v281 = vld [vmem:[%s277 + $0x8] sm:$0x1f]
        %v282 = vld [vmem:[%s1] sm:$0xff]
        %v283 = vld [vmem:[%s1 + $0x8] sm:$0xff]
        %v284 = vld [vmem:[%s1 + $0x10] sm:$0xff]
        %v285 = vld [vmem:[%s1 + $0x18] sm:$0xff]
        %v286 = vld [vmem:[%s2] sm:$0xff]
        %v287 = vld [vmem:[%s2 + $0x8] sm:$0xff]
        %v288 = vld [vmem:[%s2 + $0x10] sm:$0xff]
        %v289 = vld [vmem:[%s2 + $0x18] sm:$0xff]
        %291 = vset.pattern.permute.xlu0 0
        %292 = vperm.xlu0 %291, %v286
        %v293 = vpop.permute.xlu0 %292
        %296 = vset.pattern.permute.xlu0 0
        %297 = vperm.xlu0 %296, %v287
        %v298 = vpop.permute.xlu0 %297
        %301 = vset.pattern.permute.xlu0 0
        %302 = vperm.xlu0 %301, %v288
        %v303 = vpop.permute.xlu0 %302
        %306 = vset.pattern.permute.xlu0 0
        %307 = vperm.xlu0 %306, %v289
        %v308 = vpop.permute.xlu0 %307
        %vm310 = vcmask 39936
        %v312 = vsel %vm310, %v282, 0
        %v315 = vsel %vm310, %v283, 0
        %v318 = vsel %vm310, %v284, 0
        %v321 = vsel %vm310, %v285, 0
        %vm323 = vcmask 1044480
        %v325 = vsel %vm323, %v280, 0
        %v328 = vsel %vm323, %v281, 0
        %330 = vmatprep.subr.mxu0 %v328
        %331 = vmatpush1.msra.mxu0 %v325
        %332 = vmatprep.subr.mxu0 0.0
        %333 = vmatpush1.msra.mxu0 0.0
        %334 = vmatprep.subr.mxu0 0.0
        %335 = vmatpush1.msra.mxu0 0.0
        %336 = vmatprep.subr.mxu0 0.0
        %337 = vmatpush1.msra.mxu0 0.0
        %338 = vmatprep.subr.mxu0 0.0
        %339 = vmatpush1.msra.mxu0 0.0
        %340 = vmatprep.subr.mxu0 0.0
        %341 = vmatpush1.msra.mxu0 0.0
        %342 = vmatprep.subr.mxu0 0.0
        %343 = vmatpush1.msra.mxu0 0.0
        %344 = vmatprep.subr.mxu0 0.0
        %345 = vmatpush1.msra.mxu0 0.0
        %346 = vmatprep.subr.mxu0 0.0
        %347 = vmatpush1.msra.mxu0 0.0
        %348 = vmatprep.subr.mxu0 0.0
        %349 = vmatpush1.msra.mxu0 0.0
        %350 = vmatprep.subr.mxu0 0.0
        %351 = vmatpush1.msra.mxu0 0.0
        %352 = vmatprep.subr.mxu0 0.0
        %353 = vmatpush1.msra.mxu0 0.0
        %354 = vmatprep.subr.mxu0 0.0
        %355 = vmatpush1.msra.mxu0 0.0
        %356 = vmatprep.subr.mxu0 0.0
        %357 = vmatpush1.msra.mxu0 0.0
        %358 = vmatprep.subr.mxu0 0.0
        %359 = vmatpush1.msra.mxu0 0.0
        %360 = vmatprep.subr.mxu0 0.0
        %361 = vmatpush1.msra.mxu0 0.0
        %362 = vmatprep.subr.mxu0 0.0
        %363 = vmatpush1.msra.mxu0 0.0
        %364 = vmatprep.subr.mxu0 0.0
        %365 = vmatpush1.msra.mxu0 0.0
        %366 = vmatprep.subr.mxu0 0.0
        %367 = vmatpush1.msra.mxu0 0.0
        %368 = vmatprep.subr.mxu0 0.0
        %369 = vmatpush1.msra.mxu0 0.0
        %370 = vmatprep.subr.mxu0 0.0
        %371 = vmatpush1.msra.mxu0 0.0
        %372 = vmatprep.subr.mxu0 0.0
        %373 = vmatpush1.msra.mxu0 0.0
        %374 = vmatprep.subr.mxu0 0.0
        %375 = vmatpush1.msra.mxu0 0.0
        %376 = vmatprep.subr.mxu0 0.0
        %377 = vmatpush1.msra.mxu0 0.0
        %378 = vmatprep.subr.mxu0 0.0
        %379 = vmatpush1.msra.mxu0 0.0
        %380 = vmatprep.subr.mxu0 0.0
        %381 = vmatpush1.msra.mxu0 0.0
        %382 = vmatprep.subr.mxu0 0.0
        %383 = vmatpush1.msra.mxu0 0.0
        %384 = vmatprep.subr.mxu0 0.0
        %385 = vmatpush1.msra.mxu0 0.0
        %386 = vmatprep.subr.mxu0 0.0
        %387 = vmatpush1.msra.mxu0 0.0
        %388 = vmatprep.subr.mxu0 0.0
        %389 = vmatpush1.msra.mxu0 0.0
        %390 = vmatprep.subr.mxu0 0.0
        %391 = vmatpush1.msra.mxu0 0.0
        %392 = vmatprep.subr.mxu0 0.0
        %393 = vmatpush1.msra.mxu0 0.0
        %394 = vmatprep.mubr.f32.mxu0 0.0
        %395 = vmatmul.mubr.f32.gmra.mrb[0].mxu0 %v312
        %v396 = vpop.f32.mrb[0].mxu0
        %v397 = vadd.f32 %v293, %v396
        %v398 = vpop.f32.mrb[0].mxu0
        %v399 = vadd.f32 %v293, %v398
        %400 = vmatprep.mubr.f32.mxu0 0.0
        %401 = vmatmul.mubr.f32.gmra.mrb[0].mxu0 %v315
        %v402 = vpop.f32.mrb[0].mxu0
        %v403 = vadd.f32 %v298, %v402
        %v404 = vpop.f32.mrb[0].mxu0
        %v405 = vadd.f32 %v298, %v404
        %406 = vmatprep.mubr.f32.mxu0 0.0
        %407 = vmatmul.mubr.f32.gmra.mrb[0].mxu0 %v318
        %v408 = vpop.f32.mrb[0].mxu0
        %v409 = vadd.f32 %v303, %v408
        %v410 = vpop.f32.mrb[0].mxu0
        %v411 = vadd.f32 %v303, %v410
        %412 = vmatprep.mubr.f32.mxu0 0.0
        %413 = vmatmul.mubr.f32.gmra.mrb[0].mxu0 %v321
        %v414 = vpop.f32.mrb[0].mxu0
        %v415 = vadd.f32 %v308, %v414
        %v416 = vpop.f32.mrb[0].mxu0
        %v417 = vadd.f32 %v308, %v416
        %418 = vdwg.mxu0
        %v419 = vmax.f32 %v397, 0.0
        %v420 = vmax.f32 %v399, 0.0
        %v421 = vmax.f32 %v403, 0.0
        %v422 = vmax.f32 %v405, 0.0
        %v423 = vmax.f32 %v409, 0.0
        %v424 = vmax.f32 %v411, 0.0
        %v425 = vmax.f32 %v415, 0.0
        %v426 = vmax.f32 %v417, 0.0
        %v427 = vld [vmem:[%s3] sm:$0xff]
        %v428 = vld [vmem:[%s3 + $0x8] sm:$0xff]
        %v429 = vld [vmem:[%s3 + $0x10] sm:$0xff]
        %v430 = vld [vmem:[%s3 + $0x18] sm:$0xff]
        %v431 = vld [vmem:[%s4] sm:$0xff]
        %v432 = vld [vmem:[%s4 + $0x8] sm:$0xff]
        %v433 = vld [vmem:[%s4 + $0x10] sm:$0xff]
        %v434 = vld [vmem:[%s4 + $0x18] sm:$0xff]
        %436 = vset.pattern.permute.xlu0 0
        %437 = vperm.xlu0 %436, %v431
        %v438 = vpop.permute.xlu0 %437
        %441 = vset.pattern.permute.xlu0 0
        %442 = vperm.xlu0 %441, %v432
        %v443 = vpop.permute.xlu0 %442
        %446 = vset.pattern.permute.xlu0 0
        %447 = vperm.xlu0 %446, %v433
        %v448 = vpop.permute.xlu0 %447
        %451 = vset.pattern.permute.xlu0 0
        %452 = vperm.xlu0 %451, %v434
        %v453 = vpop.permute.xlu0 %452
        %vm455 = vcmask 261120
        %v457 = vsel %vm455, %v427, 0
        %v460 = vsel %vm455, %v428, 0
        %v463 = vsel %vm455, %v429, 0
        %v466 = vsel %vm455, %v430, 0
        %468 = vmatprep.subr.mxu0 %v420
        %469 = vmatpush1.msra.mxu0 %v419
        %470 = vmatprep.subr.mxu0 %v422
        %471 = vmatpush1.msra.mxu0 %v421
        %472 = vmatprep.subr.mxu0 %v424
        %473 = vmatpush1.msra.mxu0 %v423
        %474 = vmatprep.subr.mxu0 %v426
        %475 = vmatpush1.msra.mxu0 %v425
        %476 = vmatprep.subr.mxu0 0.0
        %477 = vmatpush1.msra.mxu0 0.0
        %478 = vmatprep.subr.mxu0 0.0
        %479 = vmatpush1.msra.mxu0 0.0
        %480 = vmatprep.subr.mxu0 0.0
        %481 = vmatpush1.msra.mxu0 0.0
        %482 = vmatprep.subr.mxu0 0.0
        %483 = vmatpush1.msra.mxu0 0.0
        %484 = vmatprep.subr.mxu0 0.0
        %485 = vmatpush1.msra.mxu0 0.0
        %486 = vmatprep.subr.mxu0 0.0
        %487 = vmatpush1.msra.mxu0 0.0
        %488 = vmatprep.subr.mxu0 0.0
        %489 = vmatpush1.msra.mxu0 0.0
        %490 = vmatprep.subr.mxu0 0.0
        %491 = vmatpush1.msra.mxu0 0.0
        %492 = vmatprep.subr.mxu0 0.0
        %493 = vmatpush1.msra.mxu0 0.0
        %494 = vmatprep.subr.mxu0 0.0
        %495 = vmatpush1.msra.mxu0 0.0
        %496 = vmatprep.subr.mxu0 0.0
        %497 = vmatpush1.msra.mxu0 0.0
        %498 = vmatprep.subr.mxu0 0.0
        %499 = vmatpush1.msra.mxu0 0.0
        %500 = vmatprep.subr.mxu0 0.0
        %501 = vmatpush1.msra.mxu0 0.0
        %502 = vmatprep.subr.mxu0 0.0
        %503 = vmatpush1.msra.mxu0 0.0
        %504 = vmatprep.subr.mxu0 0.0
        %505 = vmatpush1.msra.mxu0 0.0
        %506 = vmatprep.subr.mxu0 0.0
        %507 = vmatpush1.msra.mxu0 0.0
        %508 = vmatprep.subr.mxu0 0.0
        %509 = vmatpush1.msra.mxu0 0.0
        %510 = vmatprep.subr.mxu0 0.0
        %511 = vmatpush1.msra.mxu0 0.0
        %512 = vmatprep.subr.mxu0 0.0
        %513 = vmatpush1.msra.mxu0 0.0
        %514 = vmatprep.subr.mxu0 0.0
        %515 = vmatpush1.msra.mxu0 0.0
        %516 = vmatprep.subr.mxu0 0.0
        %517 = vmatpush1.msra.mxu0 0.0
        %518 = vmatprep.subr.mxu0 0.0
        %519 = vmatpush1.msra.mxu0 0.0
        %520 = vmatprep.subr.mxu0 0.0
        %521 = vmatpush1.msra.mxu0 0.0
        %522 = vmatprep.subr.mxu0 0.0
        %523 = vmatpush1.msra.mxu0 0.0
        %524 = vmatprep.subr.mxu0 0.0
        %525 = vmatpush1.msra.mxu0 0.0
        %526 = vmatprep.subr.mxu0 0.0
        %527 = vmatpush1.msra.mxu0 0.0
        %528 = vmatprep.subr.mxu0 0.0
        %529 = vmatpush1.msra.mxu0 0.0
        %530 = vmatprep.subr.mxu0 0.0
        %531 = vmatpush1.msra.mxu0 0.0
        %532 = vmatprep.mubr.f32.mxu0 0.0
        %533 = vmatmul.mubr.f32.gmra.mrb[0].mxu0 %v457
        %v534 = vpop.f32.mrb[0].mxu0
        %v535 = vadd.f32 %v438, %v534
        %v536 = vpop.f32.mrb[0].mxu0
        %v537 = vadd.f32 %v438, %v536
        %538 = vmatprep.mubr.f32.mxu0 0.0
        %539 = vmatmul.mubr.f32.gmra.mrb[0].mxu0 %v460
        %v540 = vpop.f32.mrb[0].mxu0
        %v541 = vadd.f32 %v443, %v540
        %v542 = vpop.f32.mrb[0].mxu0
        %v543 = vadd.f32 %v443, %v542
        %544 = vmatprep.mubr.f32.mxu0 0.0
        %545 = vmatmul.mubr.f32.gmra.mrb[0].mxu0 %v463
        %v546 = vpop.f32.mrb[0].mxu0
        %v547 = vadd.f32 %v448, %v546
        %v548 = vpop.f32.mrb[0].mxu0
        %v549 = vadd.f32 %v448, %v548
        %550 = vmatprep.mubr.f32.mxu0 0.0
        %551 = vmatmul.mubr.f32.gmra.mrb[0].mxu0 %v466
        %v552 = vpop.f32.mrb[0].mxu0
        %v553 = vadd.f32 %v453, %v552
        %v554 = vpop.f32.mrb[0].mxu0
        %v555 = vadd.f32 %v453, %v554
        %556 = vdwg.mxu0
        %v557 = vmax.f32 %v535, 0.0
        %v558 = vmax.f32 %v537, 0.0
        %v559 = vmax.f32 %v541, 0.0
        %v560 = vmax.f32 %v543, 0.0
        %v561 = vmax.f32 %v547, 0.0
        %v562 = vmax.f32 %v549, 0.0
        %v563 = vmax.f32 %v553, 0.0
        %v564 = vmax.f32 %v555, 0.0
        %v565 = vld [vmem:[%s5] sm:$0x3f]
        %v566 = vld [vmem:[%s6] sm:$0x3f]
        %568 = vset.pattern.permute.xlu0 0
        %569 = vperm.xlu0 %568, %v566
        %v570 = vpop.permute.xlu0 %569
        %v573 = vsel %vm455, %v565, 0
        %575 = vmatprep.subr.mxu0 %v558
        %576 = vmatpush1.msra.mxu0 %v557
        %577 = vmatprep.subr.mxu0 %v560
        %578 = vmatpush1.msra.mxu0 %v559
        %579 = vmatprep.subr.mxu0 %v562
        %580 = vmatpush1.msra.mxu0 %v561
        %581 = vmatprep.subr.mxu0 %v564
        %582 = vmatpush1.msra.mxu0 %v563
        %583 = vmatprep.subr.mxu0 0.0
        %584 = vmatpush1.msra.mxu0 0.0
        %585 = vmatprep.subr.mxu0 0.0
        %586 = vmatpush1.msra.mxu0 0.0
        %587 = vmatprep.subr.mxu0 0.0
        %588 = vmatpush1.msra.mxu0 0.0
        %589 = vmatprep.subr.mxu0 0.0
        %590 = vmatpush1.msra.mxu0 0.0
        %591 = vmatprep.subr.mxu0 0.0
        %592 = vmatpush1.msra.mxu0 0.0
        %593 = vmatprep.subr.mxu0 0.0
        %594 = vmatpush1.msra.mxu0 0.0
        %595 = vmatprep.subr.mxu0 0.0
        %596 = vmatpush1.msra.mxu0 0.0
        %597 = vmatprep.subr.mxu0 0.0
        %598 = vmatpush1.msra.mxu0 0.0
        %599 = vmatprep.subr.mxu0 0.0
        %600 = vmatpush1.msra.mxu0 0.0
        %601 = vmatprep.subr.mxu0 0.0
        %602 = vmatpush1.msra.mxu0 0.0
        %603 = vmatprep.subr.mxu0 0.0
        %604 = vmatpush1.msra.mxu0 0.0
        %605 = vmatprep.subr.mxu0 0.0
        %606 = vmatpush1.msra.mxu0 0.0
        %607 = vmatprep.subr.mxu0 0.0
        %608 = vmatpush1.msra.mxu0 0.0
        %609 = vmatprep.subr.mxu0 0.0
        %610 = vmatpush1.msra.mxu0 0.0
        %611 = vmatprep.subr.mxu0 0.0
        %612 = vmatpush1.msra.mxu0 0.0
        %613 = vmatprep.subr.mxu0 0.0
        %614 = vmatpush1.msra.mxu0 0.0
        %615 = vmatprep.subr.mxu0 0.0
        %616 = vmatpush1.msra.mxu0 0.0
        %617 = vmatprep.subr.mxu0 0.0
        %618 = vmatpush1.msra.mxu0 0.0
        %619 = vmatprep.subr.mxu0 0.0
        %620 = vmatpush1.msra.mxu0 0.0
        %621 = vmatprep.subr.mxu0 0.0
        %622 = vmatpush1.msra.mxu0 0.0
        %623 = vmatprep.subr.mxu0 0.0
        %624 = vmatpush1.msra.mxu0 0.0
        %625 = vmatprep.subr.mxu0 0.0
        %626 = vmatpush1.msra.mxu0 0.0
        %627 = vmatprep.subr.mxu0 0.0
        %628 = vmatpush1.msra.mxu0 0.0
        %629 = vmatprep.subr.mxu0 0.0
        %630 = vmatpush1.msra.mxu0 0.0
        %631 = vmatprep.subr.mxu0 0.0
        %632 = vmatpush1.msra.mxu0 0.0
        %633 = vmatprep.subr.mxu0 0.0
        %634 = vmatpush1.msra.mxu0 0.0
        %635 = vmatprep.subr.mxu0 0.0
        %636 = vmatpush1.msra.mxu0 0.0
        %637 = vmatprep.subr.mxu0 0.0
        %638 = vmatpush1.msra.mxu0 0.0
        %639 = vmatprep.mubr.f32.mxu0 0.0
        %640 = vmatmul.mubr.f32.gmra.mrb[0].mxu0 %v573
        %v641 = vpop.f32.mrb[0].mxu0
        %v642 = vadd.f32 %v570, %v641
        %v643 = vpop.f32.mrb[0].mxu0
        %v644 = vadd.f32 %v570, %v643
        %645 = vdwg.mxu0
        %646 = vst [vmem:[%s272] sm:$0x3f] %v642
        %647 = vst [vmem:[%s272 + $0x8] sm:$0x3f] %v644
        %s648 = sand.u32 %s181, 1
        %s649 = scalar_lea.sflag [#allocation3], %s648
        %s650 = sand.u32 %s181, 1
        %s651 = smul.addr %s650, 16
        %s652 = scalar_lea.vmem [#allocation2], %s651
        // Predicated region
        $region49: #{tpu_custom_call.1} parent=47 // pred_check
          %p653 = pneg %p191
        $region50: #{tpu_custom_call.1} parent=47 // pred_check_branch
          %655 = sbr.rel (%p653) target = $region52
        $region51: #{tpu_custom_call.1} parent=47 // pred_region
          %s656 = smul.u32 2, %s21
          %s658 = ssub.s32 256, 256
          %659 = vsyncadd %s649, %s658
          %s660 = smul.addr %s656, 128
          %s661 = scalar_lea.hbm %s7, %s660
          %s663 = sshll.u32 %s652, 4
          %s664 = int_to_ptr.vmem [resolvable:$true] %s663
          %666 = dma.vmem_to_hbm [thread:$0]  %s664, 256, %s661, %s649
        $region52: #{tpu_custom_call.1} parent=47 // pred_fallthru
          _
      $region48: #{tpu_custom_call.1} parent=5 // pred_fallthru
        _
      %p667 = scmp.le.s32.totalorder 2, %s16
      // Predicated region
      $region53: #{tpu_custom_call.1} parent=5 // pred_check
        %p668 = pneg %p667
      $region54: #{tpu_custom_call.1} parent=5 // pred_check_branch
        %670 = sbr.rel (%p668) target = $region56
      $region55: #{tpu_custom_call.1} parent=5 // pred_region
        %s671 = ssub.s32 %s16, 2
        // Predicated region
        $region57: #{tpu_custom_call.1} parent=55 // pred_check
          %p672 = pneg %p197
        $region58: #{tpu_custom_call.1} parent=55 // pred_check_branch
          %674 = sbr.rel (%p672) target = $region60
        $region59: #{tpu_custom_call.1} parent=55 // pred_region
          %s675 = sand.u32 %s182, 1
          %s676 = scalar_lea.sflag [#allocation3], %s675
          %s677 = sand.u32 %s182, 1
          %s678 = smul.addr %s677, 16
          %s679 = scalar_lea.vmem [#allocation2], %s678
          %680 = dma.done %s676, 256
        $region60: #{tpu_custom_call.1} parent=55 // pred_fallthru
          _
      $region56: #{tpu_custom_call.1} parent=5 // pred_fallthru
        _
    $region6: #{tpu_custom_call.1} parent=1 // loop_footer
      %s20 = sadd.s32 1, %s16
    $region7: #{tpu_custom_call.1} parent=1 // loop_footer_branch
      %15 = sbr.rel target = $region3
    $region8: #{tpu_custom_call.1} parent=1 // loop_exit
      _
    %681 = vsyncpa [#allocation3], 1
    %s682 = scalar_lea.sflag [#allocation3], 1
    %683 = vsyncpa %s682, 1

</llo_original>
